<compile_context>
chip_gen: v7x
topology: tpu7x:2x2x1
jax: 0.10.0
libtpu: 0.0.40
codegen_flags: <defaults>
</compile_context>

<pallas_src>
import jax
import jax.numpy as jnp
from jax.experimental import pallas as pl
from jax.experimental.pallas import tpu as pltpu
import numpy as np


def _tokens_kernel(x_ref, w_ref, add_ref, o_ref):
    # x_ref:   (tM, K)  row tile of the flattened token-row matrix (bf16/f32)
    # w_ref:   (K, D)   projection matrix (resident, constant index_map)
    # add_ref: (tM, D)  f32 additive term (pos + bias, or pos + cls for row 0)
    # o_ref:   (tM, D)  f32 output tokens (lane-dense, D on lanes)
    acc = jnp.dot(x_ref[...], w_ref[...], preferred_element_type=jnp.float32)
    o_ref[...] = (acc + add_ref[...]).astype(o_ref.dtype)


def image_embedding_forward(x, conv_w, conv_b, cls_token, pos_embed, patch_size,
                            compute_dtype=jnp.bfloat16):
    """Forward pass of the patch-embedding / prepare_tokens part.

    x:         (B, C, H, W)      NCHW, like PyTorch
    conv_w:    (D, C, ps, ps)    Conv2d weight (OIHW)
    conv_b:    (D,)              Conv2d bias
    cls_token: (1, 1, D)
    pos_embed: (1, N+1, D)
    returns:   (B, N+1, D)  float32
    """
    B, C, H, W = x.shape
    ps = patch_size
    H0, W0 = H // ps, W // ps
    N = H0 * W0
    D = conv_w.shape[0]
    K = C * ps * ps
    T = N + 1            # tokens per batch element (cls + patches)
    M = B * T            # total token rows fed to the GEMM

    # --- glue: extract non-overlapping patches (stride == kernel conv) -------
    # (B, C, H0, ps, W0, ps) -> (B, H0, W0, C, ps, ps) -> (B, N, K), K ordered
    # (c, kh, kw) to match conv_w.reshape(D, K).  Cast first so the materialized
    # intermediate is already in the (half-width) compute dtype.
    xc = x.astype(compute_dtype)
    patches = (
        xc.reshape(B, C, H0, ps, W0, ps)
        .transpose(0, 2, 4, 1, 3, 5)
        .reshape(B, N, K)
    )

    # cls row rides the GEMM as an all-zero input row per batch element, so the
    # kernel output is already the full token tensor (no post-kernel concat).
    xrows = jnp.concatenate(
        [jnp.zeros((B, 1, K), compute_dtype), patches], axis=1
    ).reshape(M, K)

    # Conv weight (D, C, ps, ps) -> projection matrix (K, D), ordering (c,kh,kw)
    w_mat = conv_w.reshape(D, K).T.astype(compute_dtype)

    # Fold conv bias, cls token and positional embedding into one f32 operand:
    #   ADD[t] = pos[t] + cls          for t == 0  (zero input row -> cls + pos)
    #   ADD[t] = pos[t] + conv_bias    for t >= 1
    add_one = jnp.concatenate(
        [
            cls_token[0].astype(jnp.float32) + pos_embed[0, 0:1, :].astype(jnp.float32),
            conv_b[None, :].astype(jnp.float32) + pos_embed[0, 1:, :].astype(jnp.float32),
        ],
        axis=0,
    )                                                        # (T, D)
    add_full = jnp.broadcast_to(add_one[None], (B, T, D)).reshape(M, D)

    # Row tiling: biggest tile that keeps MXU rows full; full dim when small.
    tM = M if M <= 128 else 128
    grid = (pl.cdiv(M, tM),)

    # NOTE(v7x): at real ViT sizes (K>=768, D>=1024) tile the weight over D and
    # set vmem_limit_bytes explicitly (64 MiB physical / 32 MiB default scoped);
    # at these toy sizes the full weight (K*D) is a few hundred KiB and resident.
    flat = pl.pallas_call(
        _tokens_kernel,
        out_shape=jax.ShapeDtypeStruct((M, D), jnp.float32),
        grid_spec=pltpu.PrefetchScalarGridSpec(
            num_scalar_prefetch=0,
            grid=grid,
            in_specs=[
                pl.BlockSpec((tM, K), lambda i: (i, 0)),   # token-row tile
                pl.BlockSpec((K, D), lambda i: (0, 0)),    # weight: VMEM resident
                pl.BlockSpec((tM, D), lambda i: (i, 0)),   # folded pos/bias/cls
            ],
            out_specs=pl.BlockSpec((tM, D), lambda i: (i, 0)),
        ),
        compiler_params=pltpu.CompilerParams(
            dimension_semantics=("parallel",),
        ),
    )(xrows, w_mat, add_full)

    # Free metadata reshape: rows are already laid out as (b, token).
    return flat.reshape(B, T, D)


def _reference_forward(x, conv_w, conv_b, cls_token, pos_embed, patch_size):
    """Pure-JAX f32 reference matching the PyTorch prepare_tokens semantics."""
    B = x.shape[0]
    D = conv_w.shape[0]
    out = jax.lax.conv_general_dilated(
        x, conv_w,
        window_strides=(patch_size, patch_size),
        padding="VALID",
        dimension_numbers=("NCHW", "OIHW", "NCHW"),
    )
    out = out + conv_b[None, :, None, None]
    out = out.reshape(B, D, -1).transpose(0, 2, 1)             # flatten(2).transpose(1,2)
    cls = jnp.broadcast_to(cls_token, (B, 1, D))
    out = jnp.concatenate([cls, out], axis=1)
    return out + pos_embed                                      # interpolate is identity here


if __name__ == "__main__":
    # Small shapes consistent with the module: img_size=32, patch_size=8,
    # in_chans=6 (module default), proj_hidd_dim=128, batch=2.
    B, C, H, W = 2, 6, 32, 32
    ps = 8
    D = 128
    N = (H // ps) * (W // ps)    # 16 patches
    K = C * ps * ps              # 384 (multiple of 128)

    key = jax.random.PRNGKey(0)
    kx, kw, kb, kc, kp = jax.random.split(key, 5)

    x = jax.random.normal(kx, (B, C, H, W), dtype=jnp.float32)
    conv_w = jax.random.normal(kw, (D, C, ps, ps), dtype=jnp.float32) * 0.02
    conv_b = jax.random.normal(kb, (D,), dtype=jnp.float32) * 0.02
    cls_token = jax.random.normal(kc, (1, 1, D), dtype=jnp.float32) * 0.02
    pos_embed = jax.random.normal(kp, (1, N + 1, D), dtype=jnp.float32) * 0.02

    ref = _reference_forward(x, conv_w, conv_b, cls_token, pos_embed, ps)
    ref = np.asarray(jax.block_until_ready(ref))

    # f32 compute path: bit-accurate check against the conv reference.
    out_f32 = image_embedding_forward(
        x, conv_w, conv_b, cls_token, pos_embed, ps, compute_dtype=jnp.float32)
    out_f32 = jax.block_until_ready(out_f32)
    np.testing.assert_allclose(np.asarray(out_f32), ref, rtol=1e-5, atol=1e-5)

    # bf16 compute path (default, MXU-native on v5e/v6e/v7x): f32 accumulation,
    # looser tolerance as noted in the perf review.
    out_bf16 = image_embedding_forward(
        x, conv_w, conv_b, cls_token, pos_embed, ps, compute_dtype=jnp.bfloat16)
    out_bf16 = jax.block_until_ready(out_bf16)
    np.testing.assert_allclose(np.asarray(out_bf16), ref, rtol=2e-2, atol=2e-2)

    assert out_bf16.shape == (B, N + 1, D)
    print("KERNEL_OK")
</pallas_src>

<mosaic_0001>
module attributes {stable_mosaic.version = 11 : i64} {
  func.func @_tokens_kernel(%arg0: i32, %arg1: memref<34x384xf32, #tpu.memory_space<vmem>>, %arg2: memref<384x128xf32, #tpu.memory_space<vmem>>, %arg3: memref<34x128xf32, #tpu.memory_space<vmem>>, %arg4: memref<34x128xf32, #tpu.memory_space<vmem>>) attributes {dimension_semantics = [#tpu.dimension_semantics<parallel>], iteration_bounds = array<i64: 1>, scalar_prefetch = 0 : i64, scratch_operands = 0 : i64, tpu.core_type = #tpu.core_type<tc>, window_params = [{transform_indices = @transform_0, window_bounds = array<i64: 34, 384>}, {pipeline_mode = #tpu.pipeline_mode<synchronous>, transform_indices = @transform_1, window_bounds = array<i64: 384, 128>}, {transform_indices = @transform_2, window_bounds = array<i64: 34, 128>}, {transform_indices = @transform_3, window_bounds = array<i64: 34, 128>}]} {
    %c0 = arith.constant 0 : index
    %c0_0 = arith.constant 0 : index
    %0 = vector.load %arg1[%c0, %c0_0] : memref<34x384xf32, #tpu.memory_space<vmem>>, vector<34x384xf32>
    %c0_1 = arith.constant 0 : index
    %c0_2 = arith.constant 0 : index
    %1 = vector.load %arg2[%c0_1, %c0_2] : memref<384x128xf32, #tpu.memory_space<vmem>>, vector<384x128xf32>
    %cst = arith.constant dense<0.000000e+00> : vector<34x128xf32>
    %2 = tpu.matmul %0, %1, %cst {dimension_numbers = #tpu.dot_dimension_numbers<[1], [0], [0], [1], [0, 0, 1, 1], [], []>} : vector<34x384xf32>, vector<384x128xf32>, vector<34x128xf32> -> vector<34x128xf32>
    %c0_3 = arith.constant 0 : index
    %c0_4 = arith.constant 0 : index
    %3 = vector.load %arg3[%c0_3, %c0_4] : memref<34x128xf32, #tpu.memory_space<vmem>>, vector<34x128xf32>
    %4 = arith.addf %2, %3 : vector<34x128xf32>
    %c0_5 = arith.constant 0 : index
    %c0_6 = arith.constant 0 : index
    %5 = vector.load %arg4[%c0_5, %c0_6] : memref<34x128xf32, #tpu.memory_space<vmem>>, vector<34x128xf32>
    tpu.vector_store %arg4[%c0_5, %c0_6], %4 {strides = array<i32>} : memref<34x128xf32, #tpu.memory_space<vmem>>, vector<34x128xf32>,
    return
  }
  func.func @transform_0(%arg0: i32) -> (i32, i32) {
    %c0_i32 = arith.constant 0 : i32
    %c0_i32_0 = arith.constant 0 : i32
    return %arg0, %c0_i32 : i32, i32
  }
  func.func @transform_1(%arg0: i32) -> (i32, i32) {
    %c0_i32 = arith.constant 0 : i32
    %c0_i32_0 = arith.constant 0 : i32
    %c0_i32_1 = arith.constant 0 : i32
    return %c0_i32, %c0_i32_0 : i32, i32
  }
  func.func @transform_2(%arg0: i32) -> (i32, i32) {
    %c0_i32 = arith.constant 0 : i32
    %c0_i32_0 = arith.constant 0 : i32
    return %arg0, %c0_i32 : i32, i32
  }
  func.func @transform_3(%arg0: i32) -> (i32, i32) {
    %c0_i32 = arith.constant 0 : i32
    %c0_i32_0 = arith.constant 0 : i32
    return %arg0, %c0_i32 : i32, i32
  }
}

</mosaic_0001>

<llo_original>
// kernel: tpu_custom_call.1
$region0: #{tpu_custom_call.1}
  #allocation0 [shape = 'u32[]', space=smem, size = 0x4, offset = 0x4, fixed_abs, tag = 'smem constant byte address 0x4 - core index']
  #allocation1 [shape = 'u32[144,128]{1,0:T(1,128)}', space=vmem, size = 0x12000, scoped, tag = 'internal scratch']
  %s0 = inlined_call_operand.hbm [shape: f32[34,384], index: 0, kind: input, shape index: {}]
  %s1 = inlined_call_operand.hbm [shape: f32[384,128], index: 1, kind: input, shape index: {}]
  %s2 = inlined_call_operand.hbm [shape: f32[34,128], index: 2, kind: input, shape index: {}]
  %s3 = inlined_call_operand.hbm [shape: f32[34,128], index: 3, kind: output, shape index: {}]
  %s4 = sld [smem:[#allocation0]]
  $region34: #{tpu_custom_call.1} parent=0
    _
  %s6 = ssub.s32 1, %s4
  %s7 = scalar_select 0, %s6, %s4
  $region1: #{tpu_custom_call.1} parent=0
    #allocation2 [shape = 'u8[61440]{0}', space=vmem, size = 0xf000, scoped, tag = 'input window, operand 0, single buffered']
    #allocation3 [shape = 's32[1]{0}', space=sflag, size = 0x4, scoped, tag = 'scoped memory for tpu_custom_call.1']
    #allocation4 [shape = 's32[1]{0}', space=sflag, size = 0x4, scoped, tag = 'scoped memory for tpu_custom_call.1']
    #allocation5 [shape = 'u8[196608]{0}', space=vmem, size = 0x30000, scoped, tag = 'input window, operand 1, single buffered']
    #allocation6 [shape = 's32[1]{0}', space=sflag, size = 0x4, scoped, tag = 'scoped memory for tpu_custom_call.1']
    #allocation7 [shape = 'u8[20480]{0}', space=vmem, size = 0x5000, scoped, tag = 'input window, operand 2, single buffered']
    #allocation8 [shape = 'u8[20480]{0}', space=vmem, size = 0x5000, scoped, tag = 'output window, operand 0, single buffered']
    %8 = vsyncpa [#allocation3], 0
    %9 = vsyncpa [#allocation6], 0
    %10 = vsyncpa [#allocation4], 0
    // Predicated region
    $region2: #{tpu_custom_call.1} parent=1 // pred_check
      _
    $region3: #{tpu_custom_call.1} parent=1 // pred_check_branch
      %12 = sbr.rel (0) target = $region5
    $region4: #{tpu_custom_call.1} parent=1 // pred_region
      %s14 = ssub.s32 1920, 1920
      %15 = vsyncadd [#allocation3], %s14
      %s16 = sshll.u32 [#allocation2], 4
      %s17 = int_to_ptr.vmem [resolvable:$true] %s16
      %22 = dma.hbm_to_vmem [thread:$0]  %s0, 1920, %s17, [#allocation3], 384, 384, 24
    $region5: #{tpu_custom_call.1} parent=1 // pred_fallthru
      _
    // Predicated region
    $region6: #{tpu_custom_call.1} parent=1 // pred_check
      _
    $region7: #{tpu_custom_call.1} parent=1 // pred_check_branch
      %24 = sbr.rel (0) target = $region9
    $region8: #{tpu_custom_call.1} parent=1 // pred_region
      %s26 = ssub.s32 6144, 6144
      %27 = vsyncadd [#allocation6], %s26
      %s28 = sshll.u32 [#allocation5], 4
      %s29 = int_to_ptr.vmem [resolvable:$true] %s28
      %34 = dma.hbm_to_vmem [thread:$0]  %s1, 6144, %s29, [#allocation6], 128, 128, 8
    $region9: #{tpu_custom_call.1} parent=1 // pred_fallthru
      _
    // Predicated region
    $region10: #{tpu_custom_call.1} parent=1 // pred_check
      _
    $region11: #{tpu_custom_call.1} parent=1 // pred_check_branch
      %36 = sbr.rel (0) target = $region13
    $region12: #{tpu_custom_call.1} parent=1 // pred_region
      %s38 = ssub.s32 640, 640
      %39 = vsyncadd [#allocation6], %s38
      %s40 = sshll.u32 [#allocation7], 4
      %s41 = int_to_ptr.vmem [resolvable:$true] %s40
      %46 = dma.hbm_to_vmem [thread:$0]  %s2, 640, %s41, [#allocation6], 128, 128, 8
    $region13: #{tpu_custom_call.1} parent=1 // pred_fallthru
      _
    // Predicated region
    $region14: #{tpu_custom_call.1} parent=1 // pred_check
      _
    $region15: #{tpu_custom_call.1} parent=1 // pred_check_branch
      %48 = sbr.rel (0) target = $region17
    $region16: #{tpu_custom_call.1} parent=1 // pred_region
      %49 = dma.done [#allocation3], 1920
    $region17: #{tpu_custom_call.1} parent=1 // pred_fallthru
      _
    // Predicated region
    $region18: #{tpu_custom_call.1} parent=1 // pred_check
      _
    $region19: #{tpu_custom_call.1} parent=1 // pred_check_branch
      %51 = sbr.rel (0) target = $region21
    $region20: #{tpu_custom_call.1} parent=1 // pred_region
      %52 = dma.done [#allocation6], 6144
    $region21: #{tpu_custom_call.1} parent=1 // pred_fallthru
      _
    // Predicated region
    $region22: #{tpu_custom_call.1} parent=1 // pred_check
      _
    $region23: #{tpu_custom_call.1} parent=1 // pred_check_branch
      %54 = sbr.rel (0) target = $region25
    $region24: #{tpu_custom_call.1} parent=1 // pred_region
      %55 = dma.done [#allocation6], 640
    $region25: #{tpu_custom_call.1} parent=1 // pred_fallthru
      _
    %v56 = vld [vmem:[#allocation2] sm:$0xff]
    %v57 = vld [vmem:[#allocation2 + $0x8] sm:$0xff]
    %v58 = vld [vmem:[#allocation2 + $0x10] sm:$0xff]
    %v59 = vld [vmem:[#allocation2 + $0x18] sm:$0xff]
    %v60 = vld [vmem:[#allocation2 + $0x20] sm:$0xff]
    %v61 = vld [vmem:[#allocation2 + $0x28] sm:$0xff]
    %v62 = vld [vmem:[#allocation2 + $0x30] sm:$0xff]
    %v63 = vld [vmem:[#allocation2 + $0x38] sm:$0xff]
    %v64 = vld [vmem:[#allocation2 + $0x40] sm:$0xff]
    %v65 = vld [vmem:[#allocation2 + $0x48] sm:$0xff]
    %v66 = vld [vmem:[#allocation2 + $0x50] sm:$0xff]
    %v67 = vld [vmem:[#allocation2 + $0x58] sm:$0xff]
    %v68 = vld [vmem:[#allocation2 + $0x60] sm:$0x3]
    %v69 = vld [vmem:[#allocation2 + $0x68] sm:$0x3]
    %v70 = vld [vmem:[#allocation2 + $0x70] sm:$0x3]
    %v71 = vld [vmem:[#allocation5] sm:$0xff]
    %v72 = vld [vmem:[#allocation5 + $0x8] sm:$0xff]
    %v73 = vld [vmem:[#allocation5 + $0x10] sm:$0xff]
    %v74 = vld [vmem:[#allocation5 + $0x18] sm:$0xff]
    %v75 = vld [vmem:[#allocation5 + $0x20] sm:$0xff]
    %v76 = vld [vmem:[#allocation5 + $0x28] sm:$0xff]
    %v77 = vld [vmem:[#allocation5 + $0x30] sm:$0xff]
    %v78 = vld [vmem:[#allocation5 + $0x38] sm:$0xff]
    %v79 = vld [vmem:[#allocation5 + $0x40] sm:$0xff]
    %v80 = vld [vmem:[#allocation5 + $0x48] sm:$0xff]
    %v81 = vld [vmem:[#allocation5 + $0x50] sm:$0xff]
    %v82 = vld [vmem:[#allocation5 + $0x58] sm:$0xff]
    %v83 = vld [vmem:[#allocation5 + $0x60] sm:$0xff]
    %v84 = vld [vmem:[#allocation5 + $0x68] sm:$0xff]
    %v85 = vld [vmem:[#allocation5 + $0x70] sm:$0xff]
    %v86 = vld [vmem:[#allocation5 + $0x78] sm:$0xff]
    %v87 = vld [vmem:[#allocation5 + $0x80] sm:$0xff]
    %v88 = vld [vmem:[#allocation5 + $0x88] sm:$0xff]
    %v89 = vld [vmem:[#allocation5 + $0x90] sm:$0xff]
    %v90 = vld [vmem:[#allocation5 + $0x98] sm:$0xff]
    %v91 = vld [vmem:[#allocation5 + $0xa0] sm:$0xff]
    %v92 = vld [vmem:[#allocation5 + $0xa8] sm:$0xff]
    %v93 = vld [vmem:[#allocation5 + $0xb0] sm:$0xff]
    %v94 = vld [vmem:[#allocation5 + $0xb8] sm:$0xff]
    %v95 = vld [vmem:[#allocation5 + $0xc0] sm:$0xff]
    %v96 = vld [vmem:[#allocation5 + $0xc8] sm:$0xff]
    %v97 = vld [vmem:[#allocation5 + $0xd0] sm:$0xff]
    %v98 = vld [vmem:[#allocation5 + $0xd8] sm:$0xff]
    %v99 = vld [vmem:[#allocation5 + $0xe0] sm:$0xff]
    %v100 = vld [vmem:[#allocation5 + $0xe8] sm:$0xff]
    %v101 = vld [vmem:[#allocation5 + $0xf0] sm:$0xff]
    %v102 = vld [vmem:[#allocation5 + $0xf8] sm:$0xff]
    %v103 = vld [vmem:[#allocation5 + $0x100] sm:$0xff]
    %v104 = vld [vmem:[#allocation5 + $0x108] sm:$0xff]
    %v105 = vld [vmem:[#allocation5 + $0x110] sm:$0xff]
    %v106 = vld [vmem:[#allocation5 + $0x118] sm:$0xff]
    %v107 = vld [vmem:[#allocation5 + $0x120] sm:$0xff]
    %v108 = vld [vmem:[#allocation5 + $0x128] sm:$0xff]
    %v109 = vld [vmem:[#allocation5 + $0x130] sm:$0xff]
    %v110 = vld [vmem:[#allocation5 + $0x138] sm:$0xff]
    %v111 = vld [vmem:[#allocation5 + $0x140] sm:$0xff]
    %v112 = vld [vmem:[#allocation5 + $0x148] sm:$0xff]
    %v113 = vld [vmem:[#allocation5 + $0x150] sm:$0xff]
    %v114 = vld [vmem:[#allocation5 + $0x158] sm:$0xff]
    %v115 = vld [vmem:[#allocation5 + $0x160] sm:$0xff]
    %v116 = vld [vmem:[#allocation5 + $0x168] sm:$0xff]
    %v117 = vld [vmem:[#allocation5 + $0x170] sm:$0xff]
    %v118 = vld [vmem:[#allocation5 + $0x178] sm:$0xff]
    %v119 = vld [vmem:[#allocation7] sm:$0xff]
    %v120 = vld [vmem:[#allocation7 + $0x8] sm:$0xff]
    %v121 = vld [vmem:[#allocation7 + $0x10] sm:$0xff]
    %v122 = vld [vmem:[#allocation7 + $0x18] sm:$0xff]
    %v123 = vld [vmem:[#allocation7 + $0x20] sm:$0x3]
    %124 = vmatprep.subr.mxu0 0.0
    %125 = vmatpush1.msra.mxu0 %v71
    %126 = vmatprep.subr.mxu0 0.0
    %127 = vmatpush1.msra.mxu0 %v72
    %128 = vmatprep.subr.mxu0 0.0
    %129 = vmatpush1.msra.mxu0 %v73
    %130 = vmatprep.subr.mxu0 0.0
    %131 = vmatpush1.msra.mxu0 %v74
    %132 = vmatprep.subr.mxu0 0.0
    %133 = vmatpush1.msra.mxu0 %v75
    %134 = vmatprep.subr.mxu0 0.0
    %135 = vmatpush1.msra.mxu0 %v76
    %136 = vmatprep.subr.mxu0 0.0
    %137 = vmatpush1.msra.mxu0 %v77
    %138 = vmatprep.subr.mxu0 0.0
    %139 = vmatpush1.msra.mxu0 %v78
    %140 = vmatprep.subr.mxu0 0.0
    %141 = vmatpush1.msra.mxu0 %v79
    %142 = vmatprep.subr.mxu0 0.0
    %143 = vmatpush1.msra.mxu0 %v80
    %144 = vmatprep.subr.mxu0 0.0
    %145 = vmatpush1.msra.mxu0 %v81
    %146 = vmatprep.subr.mxu0 0.0
    %147 = vmatpush1.msra.mxu0 %v82
    %148 = vmatprep.subr.mxu0 0.0
    %149 = vmatpush1.msra.mxu0 %v83
    %150 = vmatprep.subr.mxu0 0.0
    %151 = vmatpush1.msra.mxu0 %v84
    %152 = vmatprep.subr.mxu0 0.0
    %153 = vmatpush1.msra.mxu0 %v85
    %154 = vmatprep.subr.mxu0 0.0
    %155 = vmatpush1.msra.mxu0 %v86
    %156 = vmatprep.subr.mxu0 0.0
    %157 = vmatpush1.msra.mxu0 %v87
    %158 = vmatprep.subr.mxu0 0.0
    %159 = vmatpush1.msra.mxu0 %v88
    %160 = vmatprep.subr.mxu0 0.0
    %161 = vmatpush1.msra.mxu0 %v89
    %162 = vmatprep.subr.mxu0 0.0
    %163 = vmatpush1.msra.mxu0 %v90
    %164 = vmatprep.subr.mxu0 0.0
    %165 = vmatpush1.msra.mxu0 %v91
    %166 = vmatprep.subr.mxu0 0.0
    %167 = vmatpush1.msra.mxu0 %v92
    %168 = vmatprep.subr.mxu0 0.0
    %169 = vmatpush1.msra.mxu0 %v93
    %170 = vmatprep.subr.mxu0 0.0
    %171 = vmatpush1.msra.mxu0 %v94
    %172 = vmatprep.subr.mxu0 0.0
    %173 = vmatpush1.msra.mxu0 %v95
    %174 = vmatprep.subr.mxu0 0.0
    %175 = vmatpush1.msra.mxu0 %v96
    %176 = vmatprep.subr.mxu0 0.0
    %177 = vmatpush1.msra.mxu0 %v97
    %178 = vmatprep.subr.mxu0 0.0
    %179 = vmatpush1.msra.mxu0 %v98
    %180 = vmatprep.subr.mxu0 0.0
    %181 = vmatpush1.msra.mxu0 %v99
    %182 = vmatprep.subr.mxu0 0.0
    %183 = vmatpush1.msra.mxu0 %v100
    %184 = vmatprep.subr.mxu0 0.0
    %185 = vmatpush1.msra.mxu0 %v101
    %186 = vmatprep.subr.mxu0 0.0
    %187 = vmatpush1.msra.mxu0 %v102
    %188 = vmatprep.mubr.f32.mxu0 %v57
    %189 = vmatmul.mubr.f32.gmra.mrb[0].mxu0 %v56
    %v190 = vpop.f32.mrb[0].mxu0
    %v191 = vadd.f32 %v119, %v190
    %v192 = vpop.f32.mrb[0].mxu0
    %193 = vmatprep.mubr.f32.mxu0 %v60
    %194 = vmatmul.mubr.f32.gmra.mrb[0].mxu0 %v59
    %v195 = vpop.f32.mrb[0].mxu0
    %v196 = vadd.f32 %v120, %v195
    %v197 = vpop.f32.mrb[0].mxu0
    %198 = vmatprep.mubr.f32.mxu0 %v63
    %199 = vmatmul.mubr.f32.gmra.mrb[0].mxu0 %v62
    %v200 = vpop.f32.mrb[0].mxu0
    %v201 = vadd.f32 %v121, %v200
    %v202 = vpop.f32.mrb[0].mxu0
    %203 = vmatprep.mubr.f32.mxu0 %v66
    %204 = vmatmul.mubr.f32.gmra.mrb[0].mxu0 %v65
    %v205 = vpop.f32.mrb[0].mxu0
    %v206 = vadd.f32 %v122, %v205
    %v207 = vpop.f32.mrb[0].mxu0
    %208 = vmatprep.mubr.f32.mxu0 %v69
    %209 = vmatmul.mubr.f32.gmra.mrb[0].mxu0 %v68
    %v210 = vpop.f32.mrb[0].mxu0
    %v211 = vadd.f32 %v123, %v210
    %v212 = vpop.f32.mrb[0].mxu0
    %213 = vdwg.mxu0
    %214 = vmatprep.subr.mxu0 0.0
    %215 = vmatpush1.msra.mxu0 %v103
    %216 = vmatprep.subr.mxu0 0.0
    %217 = vmatpush1.msra.mxu0 %v104
    %218 = vmatprep.subr.mxu0 0.0
    %219 = vmatpush1.msra.mxu0 %v105
    %220 = vmatprep.subr.mxu0 0.0
    %221 = vmatpush1.msra.mxu0 %v106
    %222 = vmatprep.subr.mxu0 0.0
    %223 = vmatpush1.msra.mxu0 %v107
    %224 = vmatprep.subr.mxu0 0.0
    %225 = vmatpush1.msra.mxu0 %v108
    %226 = vmatprep.subr.mxu0 0.0
    %227 = vmatpush1.msra.mxu0 %v109
    %228 = vmatprep.subr.mxu0 0.0
    %229 = vmatpush1.msra.mxu0 %v110
    %230 = vmatprep.subr.mxu0 0.0
    %231 = vmatpush1.msra.mxu0 %v111
    %232 = vmatprep.subr.mxu0 0.0
    %233 = vmatpush1.msra.mxu0 %v112
    %234 = vmatprep.subr.mxu0 0.0
    %235 = vmatpush1.msra.mxu0 %v113
    %236 = vmatprep.subr.mxu0 0.0
    %237 = vmatpush1.msra.mxu0 %v114
    %238 = vmatprep.subr.mxu0 0.0
    %239 = vmatpush1.msra.mxu0 %v115
    %240 = vmatprep.subr.mxu0 0.0
    %241 = vmatpush1.msra.mxu0 %v116
    %242 = vmatprep.subr.mxu0 0.0
    %243 = vmatpush1.msra.mxu0 %v117
    %244 = vmatprep.subr.mxu0 0.0
    %245 = vmatpush1.msra.mxu0 %v118
    %246 = vmatprep.subr.mxu0 0.0
    %247 = vmatpush1.msra.mxu0 0.0
    %248 = vmatprep.subr.mxu0 0.0
    %249 = vmatpush1.msra.mxu0 0.0
    %250 = vmatprep.subr.mxu0 0.0
    %251 = vmatpush1.msra.mxu0 0.0
    %252 = vmatprep.subr.mxu0 0.0
    %253 = vmatpush1.msra.mxu0 0.0
    %254 = vmatprep.subr.mxu0 0.0
    %255 = vmatpush1.msra.mxu0 0.0
    %256 = vmatprep.subr.mxu0 0.0
    %257 = vmatpush1.msra.mxu0 0.0
    %258 = vmatprep.subr.mxu0 0.0
    %259 = vmatpush1.msra.mxu0 0.0
    %260 = vmatprep.subr.mxu0 0.0
    %261 = vmatpush1.msra.mxu0 0.0
    %262 = vmatprep.subr.mxu0 0.0
    %263 = vmatpush1.msra.mxu0 0.0
    %264 = vmatprep.subr.mxu0 0.0
    %265 = vmatpush1.msra.mxu0 0.0
    %266 = vmatprep.subr.mxu0 0.0
    %267 = vmatpush1.msra.mxu0 0.0
    %268 = vmatprep.subr.mxu0 0.0
    %269 = vmatpush1.msra.mxu0 0.0
    %270 = vmatprep.subr.mxu0 0.0
    %271 = vmatpush1.msra.mxu0 0.0
    %272 = vmatprep.subr.mxu0 0.0
    %273 = vmatpush1.msra.mxu0 0.0
    %274 = vmatprep.subr.mxu0 0.0
    %275 = vmatpush1.msra.mxu0 0.0
    %276 = vmatprep.subr.mxu0 0.0
    %277 = vmatpush1.msra.mxu0 0.0
    %278 = vmatprep.mubr.f32.mxu0 0.0
    %279 = vmatmul.mubr.f32.gmra.mrb[0].mxu0 %v58
    %v280 = vpop.f32.mrb[0].mxu0
    %v281 = vadd.f32 %v191, %v280
    %v282 = vpop.f32.mrb[0].mxu0
    %283 = vmatprep.mubr.f32.mxu0 0.0
    %284 = vmatmul.mubr.f32.gmra.mrb[0].mxu0 %v61
    %v285 = vpop.f32.mrb[0].mxu0
    %v286 = vadd.f32 %v196, %v285
    %v287 = vpop.f32.mrb[0].mxu0
    %288 = vmatprep.mubr.f32.mxu0 0.0
    %289 = vmatmul.mubr.f32.gmra.mrb[0].mxu0 %v64
    %v290 = vpop.f32.mrb[0].mxu0
    %v291 = vadd.f32 %v201, %v290
    %v292 = vpop.f32.mrb[0].mxu0
    %293 = vmatprep.mubr.f32.mxu0 0.0
    %294 = vmatmul.mubr.f32.gmra.mrb[0].mxu0 %v67
    %v295 = vpop.f32.mrb[0].mxu0
    %v296 = vadd.f32 %v206, %v295
    %v297 = vpop.f32.mrb[0].mxu0
    %298 = vmatprep.mubr.f32.mxu0 0.0
    %299 = vmatmul.mubr.f32.gmra.mrb[0].mxu0 %v70
    %v300 = vpop.f32.mrb[0].mxu0
    %v301 = vadd.f32 %v211, %v300
    %v302 = vpop.f32.mrb[0].mxu0
    %303 = vdwg.mxu0
    %304 = vst [vmem:[#allocation8] sm:$0xff] %v281
    %305 = vst [vmem:[#allocation8 + $0x8] sm:$0xff] %v286
    %306 = vst [vmem:[#allocation8 + $0x10] sm:$0xff] %v291
    %307 = vst [vmem:[#allocation8 + $0x18] sm:$0xff] %v296
    %308 = vst [vmem:[#allocation8 + $0x20] sm:$0x3] %v301
    // Predicated region
    $region26: #{tpu_custom_call.1} parent=1 // pred_check
      _
    $region27: #{tpu_custom_call.1} parent=1 // pred_check_branch
      %310 = sbr.rel (0) target = $region29
    $region28: #{tpu_custom_call.1} parent=1 // pred_region
      %s312 = ssub.s32 640, 640
      %313 = vsyncadd [#allocation4], %s312
      %s314 = sshll.u32 [#allocation8], 4
      %s315 = int_to_ptr.vmem [resolvable:$true] %s314
      %320 = dma.vmem_to_hbm [thread:$0]  %s315, 640, %s3, [#allocation4], 128, 128, 8
    $region29: #{tpu_custom_call.1} parent=1 // pred_fallthru
      _
    // Predicated region
    $region30: #{tpu_custom_call.1} parent=1 // pred_check
      _
    $region31: #{tpu_custom_call.1} parent=1 // pred_check_branch
      %322 = sbr.rel (0) target = $region33
    $region32: #{tpu_custom_call.1} parent=1 // pred_region
      %323 = dma.done [#allocation4], 640
    $region33: #{tpu_custom_call.1} parent=1 // pred_fallthru
      _
    %324 = vsyncpa [#allocation3], 1
    %325 = vsyncpa [#allocation6], 1
    %326 = vsyncpa [#allocation4], 1

</llo_original>
